<compile_context>
chip_gen: v5e
topology: v5e:2x2
jax: 0.10.0
libtpu: 0.0.40
codegen_flags: <defaults>
</compile_context>

<pallas_src>
import math
import jax
import jax.numpy as jnp
from jax.experimental import pallas as pl
from jax.experimental.pallas import tpu as pltpu

BN_EPS = 1e-5
LANE = 128


def _round_up(a, b):
    return (a + b - 1) // b * b


def _vmem_limit_bytes():
    # v5e/v6e: 128 MiB physical VMEM; v7x: 64 MiB.  Stay at <= half of physical
    # (double-buffered blocks + compiler scratch), capped at 64 MiB.
    try:
        cap = pltpu.get_tpu_info().vmem_capacity_bytes
    except Exception:
        cap = 128 * 1024 * 1024
    return int(min(64 * 1024 * 1024, cap // 2))


def _largest_divisor_at_most(n, cap):
    cap = max(1, min(n, cap))
    for b in range(cap, 0, -1):
        if n % b == 0:
            return b
    return 1


def _conv1x1(w, x):
    """Per-pixel channel mix: w (Cout, Cin) applied to x (Cin, S) -> (Cout, S) f32."""
    cout, cin = w.shape
    if cin >= 16:
        # The MXU is otherwise idle in this kernel, so even a low-utilization
        # matmul beats an O(Cin) unrolled VALU MAC chain for moderate channels.
        return jnp.dot(w, x, preferred_element_type=jnp.float32)
    # Tiny channel counts (this module: Cin=4, Cout=8): unrolled VPU
    # broadcast-MAC; spatial stays in lanes, MXU never touched.
    y = w[:, 0:1] * x[0:1, :]
    for ci in range(1, cin):
        y = y + w[:, ci:ci + 1] * x[ci:ci + 1, :]
    return y


# ---------------------------------------------------------------------------
# Fused path: everything resident in VMEM, one dispatch, one grid step.
# ---------------------------------------------------------------------------
def _fused_call(x_rows, w_noisy, gamma2d, beta2d, m_total, vmem_limit):
    n, cin, s_pad = x_rows.shape
    cout = w_noisy.shape[0]

    def kernel(x_ref, w_ref, g_ref, b_ref, o_ref, y_buf):
        wv = w_ref[...]
        # conv once per image; accumulate lanes-wide sums with element-wise VALU adds
        acc_s = jnp.zeros((cout, s_pad), jnp.float32)
        acc_q = jnp.zeros((cout, s_pad), jnp.float32)
        for i in range(n):                           # n is a static constant -> unrolled
            y = _conv1x1(wv, x_ref[i])               # (Cout, Sp) f32
            y_buf[i] = y
            acc_s = acc_s + y
            acc_q = acc_q + y * y
        # single cross-lane reduce + BN affine fold
        ssum = jnp.sum(acc_s, axis=1, keepdims=True)     # (Cout, 1)
        ssq = jnp.sum(acc_q, axis=1, keepdims=True)
        mean = ssum * (1.0 / m_total)
        var = ssq * (1.0 / m_total) - mean * mean        # biased var (torch normalization)
        inv_std = jax.lax.rsqrt(var + BN_EPS)
        scale = g_ref[...] * inv_std
        shift = b_ref[...] - mean * scale
        # normalize & lane-dense stores
        for i in range(n):
            o_ref[i] = (y_buf[i] * scale + shift).astype(o_ref.dtype)

    return pl.pallas_call(
        kernel,
        out_shape=jax.ShapeDtypeStruct((n, cout, s_pad), jnp.float32),
        grid=(1,),
        in_specs=[
            pl.BlockSpec((n, cin, s_pad), lambda i: (0, 0, 0)),
            pl.BlockSpec((cout, cin), lambda i: (0, 0)),
            pl.BlockSpec((cout, 1), lambda i: (0, 0)),
            pl.BlockSpec((cout, 1), lambda i: (0, 0)),
        ],
        out_specs=pl.BlockSpec((n, cout, s_pad), lambda i: (0, 0, 0)),
        scratch_shapes=[pltpu.VMEM((n, cout, s_pad), jnp.float32)],
        compiler_params=pltpu.CompilerParams(
            dimension_semantics=("arbitrary",),
            vmem_limit_bytes=vmem_limit),
    )(x_rows, w_noisy, gamma2d, beta2d)


# ---------------------------------------------------------------------------
# Two-pass fallback for data that does not fit VMEM: multi-image blocks,
# lane-dense statistic accumulators, BN scale folded into the conv weight.
# ---------------------------------------------------------------------------
def _two_pass_call(x_rows, w_noisy, gamma2d, beta2d, m_total, vmem_limit):
    n, cin, s_pad = x_rows.shape
    cout = w_noisy.shape[0]

    # images per grid step: target a few MiB of double-buffered VMEM per block
    per_image = 4 * s_pad * (cin + cout)
    b = _largest_divisor_at_most(n, max(1, (vmem_limit // 6) // per_image))
    steps = n // b
    nchunk = s_pad // LANE

    # ---- pass 1: lanes-wide sum / sum-of-squares accumulation (VALU only) ----
    def stats_kernel(x_ref, w_ref, sum_ref, sq_ref):
        i = pl.program_id(0)

        @pl.when(i == 0)
        def _():
            sum_ref[...] = jnp.zeros_like(sum_ref)
            sq_ref[...] = jnp.zeros_like(sq_ref)

        wv = w_ref[...]
        acc_s = jnp.zeros((cout, s_pad), jnp.float32)
        acc_q = jnp.zeros((cout, s_pad), jnp.float32)
        for bi in range(b):                       # static unroll over images in block
            y = _conv1x1(wv, x_ref[bi])
            acc_s = acc_s + y
            acc_q = acc_q + y * y
        # fold spatial into a lane-dense (Cout, 128) accumulator with pure
        # element-wise adds; the single cross-lane reduce happens in the wrapper.
        ps = acc_s[:, 0:LANE]
        pq = acc_q[:, 0:LANE]
        for c in range(1, nchunk):
            ps = ps + acc_s[:, c * LANE:(c + 1) * LANE]
            pq = pq + acc_q[:, c * LANE:(c + 1) * LANE]
        sum_ref[...] += ps
        sq_ref[...] += pq

    sum_l, sq_l = pl.pallas_call(
        stats_kernel,
        out_shape=(jax.ShapeDtypeStruct((cout, LANE), jnp.float32),
                   jax.ShapeDtypeStruct((cout, LANE), jnp.float32)),
        grid=(steps,),
        in_specs=[
            pl.BlockSpec((b, cin, s_pad), lambda i: (i, 0, 0),
                         pipeline_mode=pl.Buffered(3)),
            pl.BlockSpec((cout, cin), lambda i: (0, 0)),
        ],
        out_specs=(pl.BlockSpec((cout, LANE), lambda i: (0, 0)),
                   pl.BlockSpec((cout, LANE), lambda i: (0, 0))),
        compiler_params=pltpu.CompilerParams(
            dimension_semantics=("arbitrary",),
            vmem_limit_bytes=vmem_limit),
    )(x_rows, w_noisy)
    # TODO(synk): on v7x (2 TensorCores) split this reduction via a leading
    #             size-2 "parallel" grid axis with per-core partial accumulators.

    # ---- tiny wrapper-side finalize: fold BN into (w_scaled, shift) ----
    ssum = jnp.sum(sum_l, axis=1, keepdims=True)
    ssq = jnp.sum(sq_l, axis=1, keepdims=True)
    mean = ssum * (1.0 / m_total)
    var = ssq * (1.0 / m_total) - mean * mean
    inv_std = jax.lax.rsqrt(var + BN_EPS)
    scale = gamma2d * inv_std                     # (Cout, 1)
    shift = beta2d - mean * scale                 # (Cout, 1)
    w_scaled = w_noisy * scale                    # BN scale folded into the conv weight

    # ---- pass 2: conv with folded weight + shift, lane-dense stores ----
    def norm_kernel(x_ref, w_ref, shift_ref, o_ref):
        wv = w_ref[...]
        sh = shift_ref[...]
        for bi in range(b):
            y = _conv1x1(wv, x_ref[bi])
            o_ref[bi] = (y + sh).astype(o_ref.dtype)

    return pl.pallas_call(
        norm_kernel,
        out_shape=jax.ShapeDtypeStruct((n, cout, s_pad), jnp.float32),
        grid=(steps,),
        in_specs=[
            pl.BlockSpec((b, cin, s_pad), lambda i: (i, 0, 0)),
            pl.BlockSpec((cout, cin), lambda i: (0, 0)),
            pl.BlockSpec((cout, 1), lambda i: (0, 0)),
        ],
        out_specs=pl.BlockSpec((b, cout, s_pad), lambda i: (i, 0, 0)),
        compiler_params=pltpu.CompilerParams(
            dimension_semantics=("parallel",),
            vmem_limit_bytes=vmem_limit),
    )(x_rows, w_scaled, shift)


def shortcut_cb_forward(x_nchw, weight, weight_s, noise, gamma, beta):
    """x_nchw: (N, Cin, H, W); weight/weight_s/noise: (Cout, Cin, 1, 1);
    gamma/beta: (Cout,).  Returns (N, Cout, ceil(H/2), ceil(W/2)) in NCHW."""
    n, cin, h, w = x_nchw.shape
    cout = weight.shape[0]

    # 1x1 conv, stride 2, padding 0  ==  spatial subsample + per-pixel channel mix.
    x_sub = x_nchw[:, :, ::2, ::2]                           # (N, Cin, Ho, Wo)
    ho, wo = x_sub.shape[2], x_sub.shape[3]
    s = ho * wo
    s_pad = _round_up(s, LANE)                               # lane-dense blocks

    x_rows = x_sub.reshape(n, cin, s).astype(jnp.float32)    # contiguous, stays NCHW-ordered
    if s_pad != s:
        # zero pad: bias-free conv of zero is zero, so pad columns contribute
        # nothing to sum / sum-of-squares; m_total stays the true element count.
        x_rows = jnp.pad(x_rows, ((0, 0), (0, 0), (0, s_pad - s)))

    # NoisyConv2d weight perturbation -- hoisted out of the kernels (tiny).
    w_noisy = (weight.reshape(cout, cin)
               + jax.nn.sigmoid(weight_s.reshape(cout, cin)) * noise.reshape(cout, cin)
               ).astype(jnp.float32)
    gamma2d = gamma.reshape(cout, 1).astype(jnp.float32)
    beta2d = beta.reshape(cout, 1).astype(jnp.float32)

    m_total = float(n * s)                                   # true sample count per channel
    vmem_limit = _vmem_limit_bytes()

    # x + resident y scratch + out, all f32
    fused_bytes = 4 * (n * cin * s_pad + 2 * n * cout * s_pad)
    if fused_bytes <= vmem_limit // 4 and n <= 64:
        out_rows = _fused_call(x_rows, w_noisy, gamma2d, beta2d, m_total, vmem_limit)
    else:
        out_rows = _two_pass_call(x_rows, w_noisy, gamma2d, beta2d, m_total, vmem_limit)

    # drop lane padding, then contiguous reshape to NCHW (no transpose anywhere)
    return out_rows[:, :, :s].reshape(n, cout, ho, wo)


if __name__ == "__main__":
    # Module config: ShortcutCB(inplanes=4, planes=8, p_init=8, fp=False)
    inplanes, planes, p_init = 4, 8, 8
    N, H, W = 2, 16, 16

    key = jax.random.PRNGKey(0)
    k_x, k_w, k_n = jax.random.split(key, 3)

    x = jax.random.normal(k_x, (N, inplanes, H, W), dtype=jnp.float32)

    # Conv weight (Cout, Cin, 1, 1): kaiming-uniform-like init.
    fan_in = inplanes * 1 * 1
    bound = 1.0 / math.sqrt(fan_in)
    weight = jax.random.uniform(k_w, (planes, inplanes, 1, 1),
                                minval=-bound, maxval=bound, dtype=jnp.float32)

    # NoisyConv2d noise log-scale parameter: ones * s
    s_init = math.log(2 ** (1 - p_init) / (1 - 2 ** (1 - p_init)))
    weight_s = jnp.full((planes, inplanes, 1, 1), s_init, dtype=jnp.float32)

    # uniform(-1, 1) noise sample (torch.empty_like(...).uniform_(-1, 1))
    noise = jax.random.uniform(k_n, (planes, inplanes, 1, 1),
                               minval=-1.0, maxval=1.0, dtype=jnp.float32)

    # BatchNorm2d default affine init
    gamma = jnp.ones((planes,), dtype=jnp.float32)
    beta = jnp.zeros((planes,), dtype=jnp.float32)

    out = shortcut_cb_forward(x, weight, weight_s, noise, gamma, beta)
    jax.block_until_ready(out)

    # Pure-JAX reference (same forward math as the PyTorch module in training mode).
    x_sub = x[:, :, ::2, ::2]
    w_noisy_ref = (weight.reshape(planes, inplanes)
                   + jax.nn.sigmoid(weight_s.reshape(planes, inplanes))
                   * noise.reshape(planes, inplanes))
    y_ref = jnp.einsum('nchw,oc->nohw', x_sub, w_noisy_ref)
    mean = y_ref.mean(axis=(0, 2, 3), keepdims=True)
    var = y_ref.var(axis=(0, 2, 3), keepdims=True)          # biased var, as torch normalizes
    ref = ((y_ref - mean) / jnp.sqrt(var + BN_EPS)
           * gamma.reshape(1, -1, 1, 1) + beta.reshape(1, -1, 1, 1))

    assert out.shape == (N, planes, H // 2, W // 2), out.shape
    assert jnp.all(jnp.isfinite(out))
    assert jnp.allclose(out, ref, atol=1e-3, rtol=1e-3), float(jnp.max(jnp.abs(out - ref)))
    print("KERNEL_OK")
</pallas_src>

<mosaic_0001>
module attributes {stable_mosaic.version = 11 : i64} {
  func.func @kernel(%arg0: i32, %arg1: memref<2x4x128xf32, #tpu.memory_space<vmem>>, %arg2: memref<8x4xf32, #tpu.memory_space<vmem>>, %arg3: memref<8x1xf32, #tpu.memory_space<vmem>>, %arg4: memref<8x1xf32, #tpu.memory_space<vmem>>, %arg5: memref<2x8x128xf32, #tpu.memory_space<vmem>>, %arg6: memref<2x8x128xf32, #tpu.memory_space<vmem>>) attributes {dimension_semantics = [#tpu.dimension_semantics<arbitrary>], iteration_bounds = array<i64: 1>, scalar_prefetch = 0 : i64, scratch_operands = 1 : i64, tpu.core_type = #tpu.core_type<tc>, window_params = [{pipeline_mode = #tpu.pipeline_mode<synchronous>, transform_indices = @transform_0, window_bounds = array<i64: 2, 4, 128>}, {pipeline_mode = #tpu.pipeline_mode<synchronous>, transform_indices = @transform_1, window_bounds = array<i64: 8, 4>}, {pipeline_mode = #tpu.pipeline_mode<synchronous>, transform_indices = @transform_2, window_bounds = array<i64: 8, 1>}, {pipeline_mode = #tpu.pipeline_mode<synchronous>, transform_indices = @transform_3, window_bounds = array<i64: 8, 1>}, {pipeline_mode = #tpu.pipeline_mode<synchronous>, transform_indices = @transform_4, window_bounds = array<i64: 2, 8, 128>}]} {
    %c0 = arith.constant 0 : index
    %c0_0 = arith.constant 0 : index
    %0 = vector.load %arg2[%c0, %c0_0] : memref<8x4xf32, #tpu.memory_space<vmem>>, vector<8x4xf32>
    %cst = arith.constant 0.000000e+00 : f32
    %1 = vector.broadcast %cst : f32 to vector<8x128xf32>
    %cst_1 = arith.constant 0.000000e+00 : f32
    %2 = vector.broadcast %cst_1 : f32 to vector<8x128xf32>
    %c0_2 = arith.constant 0 : index
    %c0_3 = arith.constant 0 : index
    %c0_4 = arith.constant 0 : index
    %3 = vector.load %arg1[%c0_2, %c0_3, %c0_4] : memref<2x4x128xf32, #tpu.memory_space<vmem>>, vector<1x4x128xf32>
    %4 = vector.shape_cast %3 : vector<1x4x128xf32> to vector<4x128xf32>
    %5 = vector.extract_strided_slice %0 {offsets = [0, 0], sizes = [8, 1], strides = [1, 1]} : vector<8x4xf32> to vector<8x1xf32>
    %6 = vector.extract_strided_slice %4 {offsets = [0, 0], sizes = [1, 128], strides = [1, 1]} : vector<4x128xf32> to vector<1x128xf32>
    %7 = vector.broadcast %5 : vector<8x1xf32> to vector<8x128xf32>
    %8 = vector.broadcast %6 : vector<1x128xf32> to vector<8x128xf32>
    %9 = arith.mulf %7, %8 : vector<8x128xf32>
    %10 = vector.extract_strided_slice %0 {offsets = [0, 1], sizes = [8, 1], strides = [1, 1]} : vector<8x4xf32> to vector<8x1xf32>
    %11 = vector.extract_strided_slice %4 {offsets = [1, 0], sizes = [1, 128], strides = [1, 1]} : vector<4x128xf32> to vector<1x128xf32>
    %12 = vector.broadcast %10 : vector<8x1xf32> to vector<8x128xf32>
    %13 = vector.broadcast %11 : vector<1x128xf32> to vector<8x128xf32>
    %14 = arith.mulf %12, %13 : vector<8x128xf32>
    %15 = arith.addf %9, %14 : vector<8x128xf32>
    %16 = vector.extract_strided_slice %0 {offsets = [0, 2], sizes = [8, 1], strides = [1, 1]} : vector<8x4xf32> to vector<8x1xf32>
    %17 = vector.extract_strided_slice %4 {offsets = [2, 0], sizes = [1, 128], strides = [1, 1]} : vector<4x128xf32> to vector<1x128xf32>
    %18 = vector.broadcast %16 : vector<8x1xf32> to vector<8x128xf32>
    %19 = vector.broadcast %17 : vector<1x128xf32> to vector<8x128xf32>
    %20 = arith.mulf %18, %19 : vector<8x128xf32>
    %21 = arith.addf %15, %20 : vector<8x128xf32>
    %22 = vector.extract_strided_slice %0 {offsets = [0, 3], sizes = [8, 1], strides = [1, 1]} : vector<8x4xf32> to vector<8x1xf32>
    %23 = vector.extract_strided_slice %4 {offsets = [3, 0], sizes = [1, 128], strides = [1, 1]} : vector<4x128xf32> to vector<1x128xf32>
    %24 = vector.broadcast %22 : vector<8x1xf32> to vector<8x128xf32>
    %25 = vector.broadcast %23 : vector<1x128xf32> to vector<8x128xf32>
    %26 = arith.mulf %24, %25 : vector<8x128xf32>
    %27 = arith.addf %21, %26 : vector<8x128xf32>
    %c0_5 = arith.constant 0 : index
    %c0_6 = arith.constant 0 : index
    %c0_7 = arith.constant 0 : index
    %28 = vector.load %arg6[%c0_5, %c0_6, %c0_7] : memref<2x8x128xf32, #tpu.memory_space<vmem>>, vector<1x8x128xf32>
    %29 = vector.shape_cast %28 : vector<1x8x128xf32> to vector<8x128xf32>
    %30 = vector.shape_cast %27 : vector<8x128xf32> to vector<1x8x128xf32>
    tpu.vector_store %arg6[%c0_5, %c0_6, %c0_7], %30 {strides = array<i32>} : memref<2x8x128xf32, #tpu.memory_space<vmem>>, vector<1x8x128xf32>,
    %31 = arith.addf %1, %27 : vector<8x128xf32>
    %32 = arith.mulf %27, %27 : vector<8x128xf32>
    %33 = arith.addf %2, %32 : vector<8x128xf32>
    %c1 = arith.constant 1 : index
    %c0_8 = arith.constant 0 : index
    %c0_9 = arith.constant 0 : index
    %34 = vector.load %arg1[%c1, %c0_8, %c0_9] : memref<2x4x128xf32, #tpu.memory_space<vmem>>, vector<1x4x128xf32>
    %35 = vector.shape_cast %34 : vector<1x4x128xf32> to vector<4x128xf32>
    %36 = vector.extract_strided_slice %0 {offsets = [0, 0], sizes = [8, 1], strides = [1, 1]} : vector<8x4xf32> to vector<8x1xf32>
    %37 = vector.extract_strided_slice %35 {offsets = [0, 0], sizes = [1, 128], strides = [1, 1]} : vector<4x128xf32> to vector<1x128xf32>
    %38 = vector.broadcast %36 : vector<8x1xf32> to vector<8x128xf32>
    %39 = vector.broadcast %37 : vector<1x128xf32> to vector<8x128xf32>
    %40 = arith.mulf %38, %39 : vector<8x128xf32>
    %41 = vector.extract_strided_slice %0 {offsets = [0, 1], sizes = [8, 1], strides = [1, 1]} : vector<8x4xf32> to vector<8x1xf32>
    %42 = vector.extract_strided_slice %35 {offsets = [1, 0], sizes = [1, 128], strides = [1, 1]} : vector<4x128xf32> to vector<1x128xf32>
    %43 = vector.broadcast %41 : vector<8x1xf32> to vector<8x128xf32>
    %44 = vector.broadcast %42 : vector<1x128xf32> to vector<8x128xf32>
    %45 = arith.mulf %43, %44 : vector<8x128xf32>
    %46 = arith.addf %40, %45 : vector<8x128xf32>
    %47 = vector.extract_strided_slice %0 {offsets = [0, 2], sizes = [8, 1], strides = [1, 1]} : vector<8x4xf32> to vector<8x1xf32>
    %48 = vector.extract_strided_slice %35 {offsets = [2, 0], sizes = [1, 128], strides = [1, 1]} : vector<4x128xf32> to vector<1x128xf32>
    %49 = vector.broadcast %47 : vector<8x1xf32> to vector<8x128xf32>
    %50 = vector.broadcast %48 : vector<1x128xf32> to vector<8x128xf32>
    %51 = arith.mulf %49, %50 : vector<8x128xf32>
    %52 = arith.addf %46, %51 : vector<8x128xf32>
    %53 = vector.extract_strided_slice %0 {offsets = [0, 3], sizes = [8, 1], strides = [1, 1]} : vector<8x4xf32> to vector<8x1xf32>
    %54 = vector.extract_strided_slice %35 {offsets = [3, 0], sizes = [1, 128], strides = [1, 1]} : vector<4x128xf32> to vector<1x128xf32>
    %55 = vector.broadcast %53 : vector<8x1xf32> to vector<8x128xf32>
    %56 = vector.broadcast %54 : vector<1x128xf32> to vector<8x128xf32>
    %57 = arith.mulf %55, %56 : vector<8x128xf32>
    %58 = arith.addf %52, %57 : vector<8x128xf32>
    %c1_10 = arith.constant 1 : index
    %c0_11 = arith.constant 0 : index
    %c0_12 = arith.constant 0 : index
    %59 = vector.load %arg6[%c1_10, %c0_11, %c0_12] : memref<2x8x128xf32, #tpu.memory_space<vmem>>, vector<1x8x128xf32>
    %60 = vector.shape_cast %59 : vector<1x8x128xf32> to vector<8x128xf32>
    %61 = vector.shape_cast %58 : vector<8x128xf32> to vector<1x8x128xf32>
    tpu.vector_store %arg6[%c1_10, %c0_11, %c0_12], %61 {strides = array<i32>} : memref<2x8x128xf32, #tpu.memory_space<vmem>>, vector<1x8x128xf32>,
    %62 = arith.addf %31, %58 : vector<8x128xf32>
    %63 = arith.mulf %58, %58 : vector<8x128xf32>
    %64 = arith.addf %33, %63 : vector<8x128xf32>
    %cst_13 = arith.constant dense<0.000000e+00> : vector<8xf32>
    %65 = vector.multi_reduction <add>, %62, %cst_13 [1] : vector<8x128xf32> to vector<8xf32>
    %66 = vector.shape_cast %65 : vector<8xf32> to vector<8x1xf32>
    %cst_14 = arith.constant dense<0.000000e+00> : vector<8xf32>
    %67 = vector.multi_reduction <add>, %64, %cst_14 [1] : vector<8x128xf32> to vector<8xf32>
    %68 = vector.shape_cast %67 : vector<8xf32> to vector<8x1xf32>
    %cst_15 = arith.constant 7.812500e-03 : f32
    %69 = vector.broadcast %cst_15 : f32 to vector<8x1xf32>
    %70 = arith.mulf %66, %69 : vector<8x1xf32>
    %cst_16 = arith.constant 7.812500e-03 : f32
    %71 = vector.broadcast %cst_16 : f32 to vector<8x1xf32>
    %72 = arith.mulf %68, %71 : vector<8x1xf32>
    %73 = arith.mulf %70, %70 : vector<8x1xf32>
    %74 = arith.subf %72, %73 : vector<8x1xf32>
    %cst_17 = arith.constant 9.99999974E-6 : f32
    %75 = vector.broadcast %cst_17 : f32 to vector<8x1xf32>
    %76 = arith.addf %74, %75 : vector<8x1xf32>
    %77 = math.rsqrt %76 : vector<8x1xf32>
    %c0_18 = arith.constant 0 : index
    %c0_19 = arith.constant 0 : index
    %78 = vector.load %arg3[%c0_18, %c0_19] : memref<8x1xf32, #tpu.memory_space<vmem>>, vector<8x1xf32>
    %79 = arith.mulf %78, %77 : vector<8x1xf32>
    %c0_20 = arith.constant 0 : index
    %c0_21 = arith.constant 0 : index
    %80 = vector.load %arg4[%c0_20, %c0_21] : memref<8x1xf32, #tpu.memory_space<vmem>>, vector<8x1xf32>
    %81 = arith.mulf %70, %79 : vector<8x1xf32>
    %82 = arith.subf %80, %81 : vector<8x1xf32>
    %c0_22 = arith.constant 0 : index
    %c0_23 = arith.constant 0 : index
    %c0_24 = arith.constant 0 : index
    %83 = vector.load %arg6[%c0_22, %c0_23, %c0_24] : memref<2x8x128xf32, #tpu.memory_space<vmem>>, vector<1x8x128xf32>
    %84 = vector.shape_cast %83 : vector<1x8x128xf32> to vector<8x128xf32>
    %85 = vector.broadcast %79 : vector<8x1xf32> to vector<8x128xf32>
    %86 = arith.mulf %84, %85 : vector<8x128xf32>
    %87 = vector.broadcast %82 : vector<8x1xf32> to vector<8x128xf32>
    %88 = arith.addf %86, %87 : vector<8x128xf32>
    %c0_25 = arith.constant 0 : index
    %c0_26 = arith.constant 0 : index
    %c0_27 = arith.constant 0 : index
    %89 = vector.load %arg5[%c0_25, %c0_26, %c0_27] : memref<2x8x128xf32, #tpu.memory_space<vmem>>, vector<1x8x128xf32>
    %90 = vector.shape_cast %89 : vector<1x8x128xf32> to vector<8x128xf32>
    %91 = vector.shape_cast %88 : vector<8x128xf32> to vector<1x8x128xf32>
    tpu.vector_store %arg5[%c0_25, %c0_26, %c0_27], %91 {strides = array<i32>} : memref<2x8x128xf32, #tpu.memory_space<vmem>>, vector<1x8x128xf32>,
    %c1_28 = arith.constant 1 : index
    %c0_29 = arith.constant 0 : index
    %c0_30 = arith.constant 0 : index
    %92 = vector.load %arg6[%c1_28, %c0_29, %c0_30] : memref<2x8x128xf32, #tpu.memory_space<vmem>>, vector<1x8x128xf32>
    %93 = vector.shape_cast %92 : vector<1x8x128xf32> to vector<8x128xf32>
    %94 = vector.broadcast %79 : vector<8x1xf32> to vector<8x128xf32>
    %95 = arith.mulf %93, %94 : vector<8x128xf32>
    %96 = vector.broadcast %82 : vector<8x1xf32> to vector<8x128xf32>
    %97 = arith.addf %95, %96 : vector<8x128xf32>
    %c1_31 = arith.constant 1 : index
    %c0_32 = arith.constant 0 : index
    %c0_33 = arith.constant 0 : index
    %98 = vector.load %arg5[%c1_31, %c0_32, %c0_33] : memref<2x8x128xf32, #tpu.memory_space<vmem>>, vector<1x8x128xf32>
    %99 = vector.shape_cast %98 : vector<1x8x128xf32> to vector<8x128xf32>
    %100 = vector.shape_cast %97 : vector<8x128xf32> to vector<1x8x128xf32>
    tpu.vector_store %arg5[%c1_31, %c0_32, %c0_33], %100 {strides = array<i32>} : memref<2x8x128xf32, #tpu.memory_space<vmem>>, vector<1x8x128xf32>,
    return
  }
  func.func @transform_0(%arg0: i32) -> (i32, i32, i32) {
    %c0_i32 = arith.constant 0 : i32
    %c0_i32_0 = arith.constant 0 : i32
    %c0_i32_1 = arith.constant 0 : i32
    %c0_i32_2 = arith.constant 0 : i32
    return %c0_i32, %c0_i32_0, %c0_i32_1 : i32, i32, i32
  }
  func.func @transform_1(%arg0: i32) -> (i32, i32) {
    %c0_i32 = arith.constant 0 : i32
    %c0_i32_0 = arith.constant 0 : i32
    %c0_i32_1 = arith.constant 0 : i32
    return %c0_i32, %c0_i32_0 : i32, i32
  }
  func.func @transform_2(%arg0: i32) -> (i32, i32) {
    %c0_i32 = arith.constant 0 : i32
    %c0_i32_0 = arith.constant 0 : i32
    %c0_i32_1 = arith.constant 0 : i32
    return %c0_i32, %c0_i32_0 : i32, i32
  }
  func.func @transform_3(%arg0: i32) -> (i32, i32) {
    %c0_i32 = arith.constant 0 : i32
    %c0_i32_0 = arith.constant 0 : i32
    %c0_i32_1 = arith.constant 0 : i32
    return %c0_i32, %c0_i32_0 : i32, i32
  }
  func.func @transform_4(%arg0: i32) -> (i32, i32, i32) {
    %c0_i32 = arith.constant 0 : i32
    %c0_i32_0 = arith.constant 0 : i32
    %c0_i32_1 = arith.constant 0 : i32
    %c0_i32_2 = arith.constant 0 : i32
    return %c0_i32, %c0_i32_0, %c0_i32_1 : i32, i32, i32
  }
}

</mosaic_0001>

<llo_original>
// kernel: tpu_custom_call.1
$region0: #{tpu_custom_call.1}
  #allocation0 [shape = 'u32[]', space=smem, size = 0x4, offset = 0x4, fixed_abs, tag = 'smem constant byte address 0x4 - core index']
  #allocation1 [shape = 'u32[72,128]{1,0:T(1,128)}', space=vmem, size = 0x9000, scoped, tag = 'internal scratch']
  #allocation2 [shape = 'f32[2,8,128]{2,1,0:T(8,128)}', space=vmem, size = 0x2000, scoped, tag = 'scratch operand']
  %s0 = inlined_call_operand.vmem [shape: f32[2,4,128], index: 0, kind: input, shape index: {}]
  %s1 = inlined_call_operand.vmem [shape: f32[8,4], index: 1, kind: input, shape index: {}]
  %s2 = inlined_call_operand.vmem [shape: f32[8,1], index: 2, kind: input, shape index: {}]
  %s3 = inlined_call_operand.vmem [shape: f32[8,1], index: 3, kind: input, shape index: {}]
  %s4 = inlined_call_operand.hbm [shape: f32[2,8,128], index: 4, kind: output, shape index: {}]
  %s5 = sld [smem:[#allocation0]]
  $region26: #{tpu_custom_call.1} parent=0
    _
  %s7 = ssub.s32 1, %s5
  %s8 = scalar_select 0, %s7, %s5
  $region1: #{tpu_custom_call.1} parent=0
    #allocation3 [shape = 'u8[8192]{0}', space=vmem, size = 0x2000, scoped, tag = 'output window, operand 0, single buffered']
    #allocation4 [shape = 's32[1]{0}', space=sflag, size = 0x4, scoped, tag = 'scoped memory for tpu_custom_call.1']
    %9 = vsyncpa [#allocation4], 0
    // Predicated region
    $region2: #{tpu_custom_call.1} parent=1 // pred_check
      _
    $region3: #{tpu_custom_call.1} parent=1 // pred_check_branch
      %11 = sbr.rel (0) target = $region5
    $region4: #{tpu_custom_call.1} parent=1 // pred_region
      _
    $region5: #{tpu_custom_call.1} parent=1 // pred_fallthru
      _
    // Predicated region
    $region6: #{tpu_custom_call.1} parent=1 // pred_check
      _
    $region7: #{tpu_custom_call.1} parent=1 // pred_check_branch
      %13 = sbr.rel (0) target = $region9
    $region8: #{tpu_custom_call.1} parent=1 // pred_region
      _
    $region9: #{tpu_custom_call.1} parent=1 // pred_fallthru
      _
    // Predicated region
    $region10: #{tpu_custom_call.1} parent=1 // pred_check
      _
    $region11: #{tpu_custom_call.1} parent=1 // pred_check_branch
      %15 = sbr.rel (0) target = $region13
    $region12: #{tpu_custom_call.1} parent=1 // pred_region
      _
    $region13: #{tpu_custom_call.1} parent=1 // pred_fallthru
      _
    // Predicated region
    $region14: #{tpu_custom_call.1} parent=1 // pred_check
      _
    $region15: #{tpu_custom_call.1} parent=1 // pred_check_branch
      %17 = sbr.rel (0) target = $region17
    $region16: #{tpu_custom_call.1} parent=1 // pred_region
      _
    $region17: #{tpu_custom_call.1} parent=1 // pred_fallthru
      _
    %v18 = vld [vmem:[%s1] sm:$0xff]
    %v19 = vld [vmem:[%s0] sm:$0xf]
    %21 = vset.pattern.permute.xlu0 0
    %22 = vperm.xlu0 %21, %v18
    %v23 = vpop.permute.xlu0 %22
    %v25 = vperm.slane %v19, 0
    %v26 = vmul.f32 %v23, %v25
    %27 = vset.pattern.permute.xlu0 1
    %28 = vperm.xlu0 %27, %v18
    %v29 = vpop.permute.xlu0 %28
    %v31 = vperm.slane %v19, 1
    %v32 = vmul.f32 %v29, %v31
    %v33 = vadd.f32 %v26, %v32
    %34 = vset.pattern.permute.xlu0 2
    %35 = vperm.xlu0 %34, %v18
    %v36 = vpop.permute.xlu0 %35
    %v38 = vperm.slane %v19, 2
    %v39 = vmul.f32 %v36, %v38
    %v40 = vadd.f32 %v33, %v39
    %41 = vset.pattern.permute.xlu0 3
    %42 = vperm.xlu0 %41, %v18
    %v43 = vpop.permute.xlu0 %42
    %v45 = vperm.slane %v19, 3
    %v46 = vmul.f32 %v43, %v45
    %v47 = vadd.f32 %v40, %v46
    %48 = vst [vmem:[#allocation2] sm:$0xff] %v47
    %v49 = vadd.f32 %v47, 0.0
    %v50 = vmul.f32 %v47, %v47
    %v51 = vadd.f32 %v50, 0.0
    %s52 = scalar_lea.vmem %s0, 4
    %v53 = vld [vmem:[%s52] sm:$0xf]
    %v54 = vperm.slane %v53, 0
    %v55 = vmul.f32 %v23, %v54
    %v56 = vperm.slane %v53, 1
    %v57 = vmul.f32 %v29, %v56
    %v58 = vadd.f32 %v55, %v57
    %v59 = vperm.slane %v53, 2
    %v60 = vmul.f32 %v36, %v59
    %v61 = vadd.f32 %v58, %v60
    %v62 = vperm.slane %v53, 3
    %v63 = vmul.f32 %v43, %v62
    %v64 = vadd.f32 %v61, %v63
    %s65 = scalar_lea.vmem [#allocation2], 8
    %66 = vst [vmem:[%s65] sm:$0xff] %v64
    %v67 = vadd.f32 %v49, %v64
    %v68 = vmul.f32 %v64, %v64
    %v69 = vadd.f32 %v51, %v68
    %70 = vadd.xlane.f32.xlu0 %v67
    %v71 = vpop.xlane.xlu0 %70
    %72 = vadd.xlane.f32.xlu0 %v69
    %v73 = vpop.xlane.xlu0 %72
    %v74 = vmul.f32 %v71, 0.0078125
    %v75 = vmul.f32 %v73, 0.0078125
    %v76 = vmul.f32 %v74, %v74
    %v77 = vsub.f32 %v75, %v76
    %v78 = vadd.f32 %v77, 1e-05
    %v79 = vrsqrt.pop %v78
    %v80 = vmul.f32 %v79, %v78
    %v81 = vmul.f32 %v80, %v79
    %v82 = vmul.f32 0.5, %v81
    %v83 = vsub.f32 1.5, %v82
    %v84 = vmul.f32 %v79, %v83
    %vm85 = vweird.f32 %v78
    %vm86 = vweird.f32 %v79
    %vm87 = vmor %vm85, %vm86
    %v88 = vsel %vm87, %v79, %v84
    %v89 = vld [vmem:[%s2] sm:$0xff]
    %v90 = vmul.f32 %v89, %v88
    %v91 = vld [vmem:[%s3] sm:$0xff]
    %v92 = vmul.f32 %v74, %v90
    %v93 = vsub.f32 %v91, %v92
    %v94 = vld [vmem:[#allocation2] sm:$0xff]
    %96 = vset.pattern.permute.xlu0 0
    %97 = vperm.xlu0 %96, %v90
    %v98 = vpop.permute.xlu0 %97
    %v100 = vmul.f32 %v94, %v98
    %102 = vset.pattern.permute.xlu0 0
    %103 = vperm.xlu0 %102, %v93
    %v104 = vpop.permute.xlu0 %103
    %v106 = vadd.f32 %v100, %v104
    %107 = vst [vmem:[#allocation3] sm:$0xff] %v106
    %v108 = vld [vmem:[%s65] sm:$0xff]
    %v109 = vmul.f32 %v108, %v98
    %v110 = vadd.f32 %v109, %v104
    %s111 = scalar_lea.vmem [#allocation3], 8
    %112 = vst [vmem:[%s111] sm:$0xff] %v110
    // Predicated region
    $region18: #{tpu_custom_call.1} parent=1 // pred_check
      _
    $region19: #{tpu_custom_call.1} parent=1 // pred_check_branch
      %114 = sbr.rel (0) target = $region21
    $region20: #{tpu_custom_call.1} parent=1 // pred_region
      %116 = vsyncadd [#allocation4], 0
      %s117 = sshll.u32 [#allocation3], 4
      %s118 = int_to_ptr.vmem [resolvable:$true] %s117
      %s119 = sshll.u32 %s4, 4
      %s120 = int_to_ptr.hbm [resolvable:$true] %s119
      %125 = dma.vmem_to_hbm [thread:$0]  %s118, 256, %s120, [#allocation4], 128, 128, 8
    $region21: #{tpu_custom_call.1} parent=1 // pred_fallthru
      _
    // Predicated region
    $region22: #{tpu_custom_call.1} parent=1 // pred_check
      _
    $region23: #{tpu_custom_call.1} parent=1 // pred_check_branch
      %127 = sbr.rel (0) target = $region25
    $region24: #{tpu_custom_call.1} parent=1 // pred_region
      %129 = dma.done [#allocation4], 256
    $region25: #{tpu_custom_call.1} parent=1 // pred_fallthru
      _
    %130 = vsyncpa [#allocation4], 1

</llo_original>
